<compile_context>
chip_gen: v5e
topology: v5e:2x2
jax: 0.10.0
libtpu: 0.0.40
codegen_flags: <defaults>
</compile_context>

<pallas_src>
import functools
import re

import jax
import jax.numpy as jnp
from jax.experimental import pallas as pl
from jax.experimental.pallas import tpu as pltpu


def _round_up(x, m):
    return ((x + m - 1) // m) * m


def _detect_tpu():
    """Best-effort TPU generation + physical VMEM size (host-side, safe)."""
    gen = 6
    vmem = 128 << 20
    try:
        kind = jax.devices()[0].device_kind  # e.g. "TPU v5e", "TPU v6 lite"
        m = re.search(r"(\d+)", kind)
        if m:
            gen = int(m.group(1))
    except Exception:
        pass
    try:
        info = pltpu.get_tpu_info()
        for attr in ("vmem_capacity_bytes", "vmem_size_bytes", "vmem_bytes"):
            v = getattr(info, attr, None)
            if v:
                vmem = int(v)
                break
    except Exception:
        pass
    if gen >= 7:
        vmem = min(vmem, 64 << 20)
    return gen, vmem


_TPU_GEN, _TPU_VMEM = _detect_tpu()


# ----------------------------- kernel bodies -------------------------------


def _conv1d_kernel_single_k(x_ref, w_ref, b_ref, o_ref):
    # Whole contraction fits in one K tile: single pass, no scratch.
    acc = jnp.dot(x_ref[...], w_ref[...], preferred_element_type=jnp.float32)
    o_ref[...] = (acc + b_ref[...].astype(jnp.float32)).astype(o_ref.dtype)


def _conv1d_kernel_multi_k_f32out(x_ref, w_ref, b_ref, o_ref):
    # f32 output: accumulate in-place in the k-invariant (VMEM-resident)
    # output block; initialize it with the broadcast bias at k == 0.
    k = pl.program_id(2)

    @pl.when(k == 0)
    def _():
        o_ref[...] = jnp.broadcast_to(
            b_ref[...].astype(o_ref.dtype), o_ref.shape)

    o_ref[...] += jnp.dot(
        x_ref[...], w_ref[...], preferred_element_type=jnp.float32)


def _conv1d_kernel_multi_k_scratch(x_ref, w_ref, b_ref, o_ref, acc_ref):
    # Narrow output dtype: f32 scratch accumulator, downcast-only epilogue.
    k = pl.program_id(2)

    @pl.when(k == 0)
    def _():
        acc_ref[...] = jnp.broadcast_to(
            b_ref[...].astype(jnp.float32), acc_ref.shape)

    acc_ref[...] += jnp.dot(
        x_ref[...], w_ref[...], preferred_element_type=jnp.float32)

    @pl.when(k == pl.num_programs(2) - 1)
    def _():
        o_ref[...] = acc_ref[...].astype(o_ref.dtype)


# ------------------------------- wrapper ------------------------------------


@functools.partial(jax.jit, static_argnames=("tm", "tn", "tk", "compute_dtype"))
def conv1d(x, w, b, *, tm=None, tn=None, tk=None, compute_dtype=None):
    """Equivalent of Conv1D.forward with rf == 1.

    x: (..., nx) -> (..., nf);  w: (nx, nf);  b: (nf,)
    compute_dtype: optionally cast x/w (e.g. jnp.bfloat16) for the MXU fast
                   path; accumulation and bias-add stay in f32.
    """
    nx, nf = w.shape
    out_dtype = x.dtype
    size_out = x.shape[:-1] + (nf,)

    x2d = x.reshape(-1, nx)
    M = x2d.shape[0]

    if compute_dtype is not None:
        x2d = x2d.astype(compute_dtype)
        w = w.astype(compute_dtype)

    in_dtype = x2d.dtype
    in_item = jnp.dtype(in_dtype).itemsize
    out_item = jnp.dtype(out_dtype).itemsize
    b_item = jnp.dtype(b.dtype).itemsize
    gen = _TPU_GEN

    # ---- generation / dtype aware default tile sizes -----------------------
    if tm is None or tn is None or tk is None:
        if in_item <= 2:
            dtm, dtn, dtk = 1024, 1024, 2048   # bf16 operands: ~24 MiB buffered
        elif gen >= 7:
            dtm, dtn, dtk = 512, 512, 1024     # f32 operands, 64 MiB VMEM
        else:
            dtm, dtn, dtk = 1024, 1024, 2048   # f32 operands, 128 MiB VMEM
        tm = tm or dtm
        tn = tn or dtn
        tk = tk or dtk

    # Layout-legal tile sizes, clamped to the (rounded) problem size.
    sublane = 8 if in_item >= 4 else (16 if in_item == 2 else 32)
    lane_round = 256 if gen >= 6 else 128      # match 2x256^2 MXU on v6e/v7x
    tm_ = _round_up(min(tm, _round_up(M, sublane)), sublane)
    tn_ = _round_up(min(tn, _round_up(nf, lane_round)), lane_round)
    tk_ = _round_up(min(tk, _round_up(nx, lane_round)), lane_round)

    # Padded K / N extents (weights padded once; the activation is only padded
    # when the contraction dim itself is ragged w.r.t. tk_ — the K tail must be
    # exact zeros or garbage would corrupt valid output rows).
    Kp = _round_up(nx, tk_)
    Np = _round_up(nf, tn_)

    grid_k = Kp // tk_
    grid_n = Np // tn_
    grid_m = (M + tm_ - 1) // tm_              # ragged M -> partial edge block

    # v7x has 2 TensorCores: keep >= 2 blocks on the parallel axes if possible.
    if gen >= 7 and grid_m * grid_n == 1 and M >= 2 * sublane:
        tm_ = _round_up((M + 1) // 2, sublane)
        grid_m = (M + tm_ - 1) // tm_

    if Kp != nx:
        x2d = jnp.pad(x2d, ((0, 0), (0, Kp - nx)))
    wp = w if (Kp == nx and Np == nf) else jnp.pad(
        w, ((0, Kp - nx), (0, Np - nf)))
    b2d = b.reshape(1, nf)
    if Np != nf:
        b2d = jnp.pad(b2d, ((0, 0), (0, Np - nf)))

    # ---- kernel variant selection ------------------------------------------
    f32_out = jnp.dtype(out_dtype) == jnp.float32
    if grid_k == 1:
        kernel = _conv1d_kernel_single_k
        scratch_shapes = []
        scratch_bytes = 0
    elif f32_out:
        kernel = _conv1d_kernel_multi_k_f32out
        scratch_shapes = []
        scratch_bytes = 0
    else:
        kernel = _conv1d_kernel_multi_k_scratch
        scratch_shapes = [pltpu.VMEM((tm_, tn_), jnp.float32)]
        scratch_bytes = tm_ * tn_ * 4

    # VMEM: double-buffered tiles + (optional) accumulator; request ~1.4x.
    need = (2 * (tm_ * tk_ * in_item + tk_ * tn_ * in_item
                 + tn_ * b_item + tm_ * tn_ * out_item)
            + scratch_bytes)
    cap = min((56 << 20) if gen >= 7 else (110 << 20),
              max(32 << 20, _TPU_VMEM - (8 << 20)))
    vmem_limit = int(min(cap, max(32 << 20, int(1.4 * need))))

    cost = pl.CostEstimate(
        flops=2 * M * Kp * Np,
        transcendentals=0,
        bytes_accessed=int(grid_n * M * Kp * in_item      # x re-read per N tile
                           + grid_m * Kp * Np * in_item   # w re-read per M tile
                           + grid_m * Np * b_item
                           + M * Np * out_item),
    )

    out = pl.pallas_call(
        kernel,
        out_shape=jax.ShapeDtypeStruct((M, Np), out_dtype),
        # Grid order (n, m, k): the weight tile is the slowest-varying operand
        # (VMEM-resident across the M sweep when grid_k == 1); K is last so
        # accumulator revisits are consecutive.
        grid=(grid_n, grid_m, grid_k),
        in_specs=[
            pl.BlockSpec((tm_, tk_), lambda n, m, k: (m, k)),   # x tile
            pl.BlockSpec((tk_, tn_), lambda n, m, k: (k, n)),   # weight tile
            pl.BlockSpec((1, tn_), lambda n, m, k: (0, n)),     # bias tile
        ],
        out_specs=pl.BlockSpec((tm_, tn_), lambda n, m, k: (m, n)),
        scratch_shapes=scratch_shapes,
        compiler_params=pltpu.CompilerParams(
            dimension_semantics=("parallel", "parallel", "arbitrary"),
            vmem_limit_bytes=vmem_limit,
        ),
        cost_estimate=cost,
    )(x2d, wp, b2d)

    if Np != nf:
        out = out[:, :nf]
    return out.reshape(size_out)


if __name__ == "__main__":
    # Module config: Conv1D(nf, rf=1, nx)
    nx, nf = 32, 64
    batch, seq = 2, 8

    key = jax.random.PRNGKey(0)
    kx, kw, kx2 = jax.random.split(key, 3)

    # Deterministic init matching nn.init.normal_(w, std=0.02), b = zeros.
    w = (0.02 * jax.random.normal(kw, (nx, nf))).astype(jnp.float32)
    b = jnp.zeros((nf,), dtype=jnp.float32)
    x = jax.random.normal(kx, (batch, seq, nx), dtype=jnp.float32)

    # f32 path — exact semantics of torch.addmm.
    y = jax.block_until_ready(conv1d(x, w, b))
    y_ref = (x.reshape(-1, nx) @ w + b).reshape(batch, seq, nf)
    assert y.shape == (batch, seq, nf)
    assert jnp.allclose(y, y_ref, atol=1e-5, rtol=1e-5)

    # Ragged leading dims (exercises the partial-M-block / padding paths).
    x2 = jax.random.normal(kx2, (3, 5, nx), dtype=jnp.float32)
    y2 = jax.block_until_ready(conv1d(x2, w, b))
    y2_ref = (x2.reshape(-1, nx) @ w + b).reshape(3, 5, nf)
    assert jnp.allclose(y2, y2_ref, atol=1e-5, rtol=1e-5)

    # bf16 operand path (MXU fast path, f32 accumulation) — looser tolerance.
    y3 = jax.block_until_ready(conv1d(x, w, b, compute_dtype=jnp.bfloat16))
    assert jnp.allclose(y3, y_ref, atol=5e-3, rtol=5e-2)

    print("KERNEL_OK")
</pallas_src>

<mosaic_0001>
module attributes {stable_mosaic.version = 11 : i64} {
  func.func @_conv1d_kernel_single_k(%arg0: i32, %arg1: i32, %arg2: i32, %arg3: memref<16x256xf32, #tpu.memory_space<vmem>>, %arg4: memref<256x256xf32, #tpu.memory_space<vmem>>, %arg5: memref<1x256xf32, #tpu.memory_space<vmem>>, %arg6: memref<16x256xf32, #tpu.memory_space<vmem>>) attributes {dimension_semantics = [#tpu.dimension_semantics<parallel>, #tpu.dimension_semantics<parallel>, #tpu.dimension_semantics<arbitrary>], iteration_bounds = array<i64: 1, 1, 1>, scalar_prefetch = 0 : i64, scratch_operands = 0 : i64, tpu.core_type = #tpu.core_type<tc>, window_params = [{transform_indices = @transform_0, window_bounds = array<i64: 16, 256>}, {transform_indices = @transform_1, window_bounds = array<i64: 256, 256>}, {transform_indices = @transform_2, window_bounds = array<i64: 1, 256>}, {transform_indices = @transform_3, window_bounds = array<i64: 16, 256>}]} {
    %c0 = arith.constant 0 : index
    %c0_0 = arith.constant 0 : index
    %0 = vector.load %arg3[%c0, %c0_0] : memref<16x256xf32, #tpu.memory_space<vmem>>, vector<16x256xf32>
    %c0_1 = arith.constant 0 : index
    %c0_2 = arith.constant 0 : index
    %1 = vector.load %arg4[%c0_1, %c0_2] : memref<256x256xf32, #tpu.memory_space<vmem>>, vector<256x256xf32>
    %cst = arith.constant dense<0.000000e+00> : vector<16x256xf32>
    %2 = tpu.matmul %0, %1, %cst {dimension_numbers = #tpu.dot_dimension_numbers<[1], [0], [0], [1], [0, 0, 1, 1], [], []>} : vector<16x256xf32>, vector<256x256xf32>, vector<16x256xf32> -> vector<16x256xf32>
    %c0_3 = arith.constant 0 : index
    %c0_4 = arith.constant 0 : index
    %3 = vector.load %arg5[%c0_3, %c0_4] : memref<1x256xf32, #tpu.memory_space<vmem>>, vector<1x256xf32>
    %4 = vector.broadcast %3 : vector<1x256xf32> to vector<16x256xf32>
    %5 = arith.addf %2, %4 : vector<16x256xf32>
    %c0_5 = arith.constant 0 : index
    %c0_6 = arith.constant 0 : index
    %6 = vector.load %arg6[%c0_5, %c0_6] : memref<16x256xf32, #tpu.memory_space<vmem>>, vector<16x256xf32>
    tpu.vector_store %arg6[%c0_5, %c0_6], %5 {strides = array<i32>} : memref<16x256xf32, #tpu.memory_space<vmem>>, vector<16x256xf32>,
    return
  }
  func.func @transform_0(%arg0: i32, %arg1: i32, %arg2: i32) -> (i32, i32) {
    %c0_i32 = arith.constant 0 : i32
    return %arg1, %arg2 : i32, i32
  }
  func.func @transform_1(%arg0: i32, %arg1: i32, %arg2: i32) -> (i32, i32) {
    %c0_i32 = arith.constant 0 : i32
    return %arg2, %arg0 : i32, i32
  }
  func.func @transform_2(%arg0: i32, %arg1: i32, %arg2: i32) -> (i32, i32) {
    %c0_i32 = arith.constant 0 : i32
    %c0_i32_0 = arith.constant 0 : i32
    return %c0_i32, %arg0 : i32, i32
  }
  func.func @transform_3(%arg0: i32, %arg1: i32, %arg2: i32) -> (i32, i32) {
    %c0_i32 = arith.constant 0 : i32
    return %arg1, %arg0 : i32, i32
  }
}

</mosaic_0001>

<llo_original>
// kernel: conv1d.1
$region0: #{conv1d.1}
  #allocation0 [shape = 'u32[]', space=smem, size = 0x4, offset = 0x4, fixed_abs, tag = 'smem constant byte address 0x4 - core index']
  #allocation1 [shape = 'u32[72,128]{1,0:T(1,128)}', space=vmem, size = 0x9000, scoped, tag = 'internal scratch']
  %s0 = inlined_call_operand.vmem [shape: f32[16,256], index: 0, kind: input, shape index: {}]
  %s1 = inlined_call_operand.vmem [shape: f32[256,256], index: 1, kind: input, shape index: {}]
  %s2 = inlined_call_operand.vmem [shape: f32[1,256], index: 2, kind: input, shape index: {}]
  %s3 = inlined_call_operand.vmem [shape: f32[16,256], index: 3, kind: output, shape index: {}]
  %s4 = sld [smem:[#allocation0]]
  $region22: #{conv1d.1} parent=0
    _
  %s6 = ssub.s32 1, %s4
  %s7 = scalar_select 0, %s6, %s4
  // Predicated region
  $region2: #{conv1d.1} parent=0 // pred_check
    _
  $region3: #{conv1d.1} parent=0 // pred_check_branch
    %9 = sbr.rel (0) target = $region5
  $region4: #{conv1d.1} parent=0 // pred_region
    _
  $region5: #{conv1d.1} parent=0 // pred_fallthru
    _
  // Predicated region
  $region6: #{conv1d.1} parent=0 // pred_check
    _
  $region7: #{conv1d.1} parent=0 // pred_check_branch
    %11 = sbr.rel (0) target = $region9
  $region8: #{conv1d.1} parent=0 // pred_region
    _
  $region9: #{conv1d.1} parent=0 // pred_fallthru
    _
  // Predicated region
  $region10: #{conv1d.1} parent=0 // pred_check
    _
  $region11: #{conv1d.1} parent=0 // pred_check_branch
    %13 = sbr.rel (0) target = $region13
  $region12: #{conv1d.1} parent=0 // pred_region
    _
  $region13: #{conv1d.1} parent=0 // pred_fallthru
    _
  %v14 = vld [vmem:[%s0] sm:$0xff]
  %v15 = vld [vmem:[%s0 + $0x8] sm:$0xff]
  %v16 = vld [vmem:[%s0 + $0x10] sm:$0xff]
  %v17 = vld [vmem:[%s0 + $0x18] sm:$0xff]
  %v18 = vld [vmem:[%s1] sm:$0xff]
  %v19 = vld [vmem:[%s1 + $0x8] sm:$0xff]
  %v20 = vld [vmem:[%s1 + $0x10] sm:$0xff]
  %v21 = vld [vmem:[%s1 + $0x18] sm:$0xff]
  %v22 = vld [vmem:[%s1 + $0x20] sm:$0xff]
  %v23 = vld [vmem:[%s1 + $0x28] sm:$0xff]
  %v24 = vld [vmem:[%s1 + $0x30] sm:$0xff]
  %v25 = vld [vmem:[%s1 + $0x38] sm:$0xff]
  %v26 = vld [vmem:[%s1 + $0x40] sm:$0xff]
  %v27 = vld [vmem:[%s1 + $0x48] sm:$0xff]
  %v28 = vld [vmem:[%s1 + $0x50] sm:$0xff]
  %v29 = vld [vmem:[%s1 + $0x58] sm:$0xff]
  %v30 = vld [vmem:[%s1 + $0x60] sm:$0xff]
  %v31 = vld [vmem:[%s1 + $0x68] sm:$0xff]
  %v32 = vld [vmem:[%s1 + $0x70] sm:$0xff]
  %v33 = vld [vmem:[%s1 + $0x78] sm:$0xff]
  %v34 = vld [vmem:[%s1 + $0x80] sm:$0xff]
  %v35 = vld [vmem:[%s1 + $0x88] sm:$0xff]
  %v36 = vld [vmem:[%s1 + $0x90] sm:$0xff]
  %v37 = vld [vmem:[%s1 + $0x98] sm:$0xff]
  %v38 = vld [vmem:[%s1 + $0xa0] sm:$0xff]
  %v39 = vld [vmem:[%s1 + $0xa8] sm:$0xff]
  %v40 = vld [vmem:[%s1 + $0xb0] sm:$0xff]
  %v41 = vld [vmem:[%s1 + $0xb8] sm:$0xff]
  %v42 = vld [vmem:[%s1 + $0xc0] sm:$0xff]
  %v43 = vld [vmem:[%s1 + $0xc8] sm:$0xff]
  %v44 = vld [vmem:[%s1 + $0xd0] sm:$0xff]
  %v45 = vld [vmem:[%s1 + $0xd8] sm:$0xff]
  %v46 = vld [vmem:[%s1 + $0xe0] sm:$0xff]
  %v47 = vld [vmem:[%s1 + $0xe8] sm:$0xff]
  %v48 = vld [vmem:[%s1 + $0xf0] sm:$0xff]
  %v49 = vld [vmem:[%s1 + $0xf8] sm:$0xff]
  %v50 = vld [vmem:[%s1 + $0x100] sm:$0xff]
  %v51 = vld [vmem:[%s1 + $0x108] sm:$0xff]
  %v52 = vld [vmem:[%s1 + $0x110] sm:$0xff]
  %v53 = vld [vmem:[%s1 + $0x118] sm:$0xff]
  %v54 = vld [vmem:[%s1 + $0x120] sm:$0xff]
  %v55 = vld [vmem:[%s1 + $0x128] sm:$0xff]
  %v56 = vld [vmem:[%s1 + $0x130] sm:$0xff]
  %v57 = vld [vmem:[%s1 + $0x138] sm:$0xff]
  %v58 = vld [vmem:[%s1 + $0x140] sm:$0xff]
  %v59 = vld [vmem:[%s1 + $0x148] sm:$0xff]
  %v60 = vld [vmem:[%s1 + $0x150] sm:$0xff]
  %v61 = vld [vmem:[%s1 + $0x158] sm:$0xff]
  %v62 = vld [vmem:[%s1 + $0x160] sm:$0xff]
  %v63 = vld [vmem:[%s1 + $0x168] sm:$0xff]
  %v64 = vld [vmem:[%s1 + $0x170] sm:$0xff]
  %v65 = vld [vmem:[%s1 + $0x178] sm:$0xff]
  %v66 = vld [vmem:[%s1 + $0x180] sm:$0xff]
  %v67 = vld [vmem:[%s1 + $0x188] sm:$0xff]
  %v68 = vld [vmem:[%s1 + $0x190] sm:$0xff]
  %v69 = vld [vmem:[%s1 + $0x198] sm:$0xff]
  %v70 = vld [vmem:[%s1 + $0x1a0] sm:$0xff]
  %v71 = vld [vmem:[%s1 + $0x1a8] sm:$0xff]
  %v72 = vld [vmem:[%s1 + $0x1b0] sm:$0xff]
  %v73 = vld [vmem:[%s1 + $0x1b8] sm:$0xff]
  %v74 = vld [vmem:[%s1 + $0x1c0] sm:$0xff]
  %v75 = vld [vmem:[%s1 + $0x1c8] sm:$0xff]
  %v76 = vld [vmem:[%s1 + $0x1d0] sm:$0xff]
  %v77 = vld [vmem:[%s1 + $0x1d8] sm:$0xff]
  %v78 = vld [vmem:[%s1 + $0x1e0] sm:$0xff]
  %v79 = vld [vmem:[%s1 + $0x1e8] sm:$0xff]
  %v80 = vld [vmem:[%s1 + $0x1f0] sm:$0xff]
  %v81 = vld [vmem:[%s1 + $0x1f8] sm:$0xff]
  %v82 = vld [vmem:[%s2] sm:$0x3]
  %v84 = vperm.slane %v82, 0
  %v85 = vperm.slane %v82, 1
  %88 = vmatpush.msra.mxu0 %v48
  %89 = vmatpush.msra.mxu0 %v46
  %90 = vmatpush.msra.mxu0 %v44
  %91 = vmatpush.msra.mxu0 %v42
  %92 = vmatpush.msra.mxu0 %v40
  %93 = vmatpush.msra.mxu0 %v38
  %94 = vmatpush.msra.mxu0 %v36
  %95 = vmatpush.msra.mxu0 %v34
  %96 = vmatpush.msra.mxu0 %v32
  %97 = vmatpush.msra.mxu0 %v30
  %98 = vmatpush.msra.mxu0 %v28
  %99 = vmatpush.msra.mxu0 %v26
  %100 = vmatpush.msra.mxu0 %v24
  %101 = vmatpush.msra.mxu0 %v22
  %102 = vmatpush.msra.mxu0 %v20
  %103 = vmatpush.msra.mxu0 %v18
  %104 = vmatmul.f32.gmra.mxu0 %v14
  %v105 = vpop.f32.mrf.mxu0
  %v106 = vadd.f32 %v84, %v105
  %107 = vmatmul.f32.gmra.mxu0 %v16
  %v108 = vpop.f32.mrf.mxu0
  %v109 = vadd.f32 %v84, %v108
  %110 = vdwg.mxu0
  %111 = vmatpush.msra.mxu0 %v80
  %112 = vmatpush.msra.mxu0 %v78
  %113 = vmatpush.msra.mxu0 %v76
  %114 = vmatpush.msra.mxu0 %v74
  %115 = vmatpush.msra.mxu0 %v72
  %116 = vmatpush.msra.mxu0 %v70
  %117 = vmatpush.msra.mxu0 %v68
  %118 = vmatpush.msra.mxu0 %v66
  %119 = vmatpush.msra.mxu0 %v64
  %120 = vmatpush.msra.mxu0 %v62
  %121 = vmatpush.msra.mxu0 %v60
  %122 = vmatpush.msra.mxu0 %v58
  %123 = vmatpush.msra.mxu0 %v56
  %124 = vmatpush.msra.mxu0 %v54
  %125 = vmatpush.msra.mxu0 %v52
  %126 = vmatpush.msra.mxu0 %v50
  %127 = vmatmul.f32.gmra.mxu0 %v15
  %v128 = vpop.f32.mrf.mxu0
  %v129 = vadd.f32 %v106, %v128
  %130 = vmatmul.f32.gmra.mxu0 %v17
  %v131 = vpop.f32.mrf.mxu0
  %v132 = vadd.f32 %v109, %v131
  %133 = vdwg.mxu0
  %134 = vmatpush.msra.mxu0 %v49
  %135 = vmatpush.msra.mxu0 %v47
  %136 = vmatpush.msra.mxu0 %v45
  %137 = vmatpush.msra.mxu0 %v43
  %138 = vmatpush.msra.mxu0 %v41
  %139 = vmatpush.msra.mxu0 %v39
  %140 = vmatpush.msra.mxu0 %v37
  %141 = vmatpush.msra.mxu0 %v35
  %142 = vmatpush.msra.mxu0 %v33
  %143 = vmatpush.msra.mxu0 %v31
  %144 = vmatpush.msra.mxu0 %v29
  %145 = vmatpush.msra.mxu0 %v27
  %146 = vmatpush.msra.mxu0 %v25
  %147 = vmatpush.msra.mxu0 %v23
  %148 = vmatpush.msra.mxu0 %v21
  %149 = vmatpush.msra.mxu0 %v19
  %150 = vmatmul.f32.gmra.mxu0 %v14
  %v151 = vpop.f32.mrf.mxu0
  %v152 = vadd.f32 %v85, %v151
  %153 = vmatmul.f32.gmra.mxu0 %v16
  %v154 = vpop.f32.mrf.mxu0
  %v155 = vadd.f32 %v85, %v154
  %156 = vdwg.mxu0
  %157 = vmatpush.msra.mxu0 %v81
  %158 = vmatpush.msra.mxu0 %v79
  %159 = vmatpush.msra.mxu0 %v77
  %160 = vmatpush.msra.mxu0 %v75
  %161 = vmatpush.msra.mxu0 %v73
  %162 = vmatpush.msra.mxu0 %v71
  %163 = vmatpush.msra.mxu0 %v69
  %164 = vmatpush.msra.mxu0 %v67
  %165 = vmatpush.msra.mxu0 %v65
  %166 = vmatpush.msra.mxu0 %v63
  %167 = vmatpush.msra.mxu0 %v61
  %168 = vmatpush.msra.mxu0 %v59
  %169 = vmatpush.msra.mxu0 %v57
  %170 = vmatpush.msra.mxu0 %v55
  %171 = vmatpush.msra.mxu0 %v53
  %172 = vmatpush.msra.mxu0 %v51
  %173 = vmatmul.f32.gmra.mxu0 %v15
  %v174 = vpop.f32.mrf.mxu0
  %v175 = vadd.f32 %v152, %v174
  %176 = vmatmul.f32.gmra.mxu0 %v17
  %v177 = vpop.f32.mrf.mxu0
  %v178 = vadd.f32 %v155, %v177
  %179 = vdwg.mxu0
  %180 = vst [vmem:[%s3] sm:$0xff] %v129
  %181 = vst [vmem:[%s3 + $0x8] sm:$0xff] %v175
  %182 = vst [vmem:[%s3 + $0x10] sm:$0xff] %v132
  %183 = vst [vmem:[%s3 + $0x18] sm:$0xff] %v178
  // Predicated region
  $region14: #{conv1d.1} parent=0 // pred_check
    _
  $region15: #{conv1d.1} parent=0 // pred_check_branch
    %185 = sbr.rel (0) target = $region17
  $region16: #{conv1d.1} parent=0 // pred_region
    _
  $region17: #{conv1d.1} parent=0 // pred_fallthru
    _
  // Predicated region
  $region18: #{conv1d.1} parent=0 // pred_check
    _
  $region19: #{conv1d.1} parent=0 // pred_check_branch
    %187 = sbr.rel (0) target = $region21
  $region20: #{conv1d.1} parent=0 // pred_region
    _
  $region21: #{conv1d.1} parent=0 // pred_fallthru
    _

</llo_original>
